<compile_context>
chip_gen: v6e
topology: v6e:2x2x1
jax: 0.10.0
libtpu: 0.0.40
codegen_flags: <defaults>
</compile_context>

<pallas_src>
import functools

import jax
import jax.numpy as jnp
from jax.experimental import pallas as pl
from jax.experimental.pallas import tpu as pltpu


def _round_up(v, m):
    return ((v + m - 1) // m) * m


def _deep_rbf_kernel(use_l2, compute_dtype,
                     x_ref, w1t_ref, b1_ref, w2a_ref, b2a_ref, sel_ref, out_ref):
    """One batch tile of the full forward (all operands already in VMEM).

    Shapes:
      x_ref   : (TB, D)        f32, cast to compute_dtype in-kernel
      w1t_ref : (D, H)         compute_dtype
      b1_ref  : (1, H)         f32
      w2a_ref : (H, KF_pad)    compute_dtype  (w2.T @ A_fused, zero padded lanes)
      b2a_ref : (1, KF_pad)    f32            (b2 @ A_fused + b_rbf, zero padded lanes)
      sel_ref : (KF_pad, K_pad) f32 0/1 block-indicator matrix
      out_ref : (TB, K_pad)    f32, lane-dense padded output
    """
    x = x_ref[...].astype(compute_dtype)

    # Linear -> ReLU  (MXU matmul, f32 accumulation; VPU work in f32)
    h = jnp.dot(x, w1t_ref[...], preferred_element_type=jnp.float32) + b1_ref[...]
    h = jnp.maximum(h, 0.0)

    # Fused (second Linear + per-class affine):  (TB, H) @ (H, K*F) fills the MXU lanes.
    t = (jnp.dot(h.astype(w2a_ref.dtype), w2a_ref[...],
                 preferred_element_type=jnp.float32) + b2a_ref[...])

    red = t * t if use_l2 else jnp.abs(t)
    # Per-class reduction as a matmul against the 0/1 indicator -> (TB, K_pad).
    d = jnp.dot(red, sel_ref[...], preferred_element_type=jnp.float32)
    if use_l2:
        d = jnp.sqrt(d)
    out_ref[...] = d.astype(out_ref.dtype)


def deep_rbf_forward(x, w1, b1, w2, b2, A, bb, *, distance_metric="l2",
                     block_b=1024, compute_dtype=jnp.bfloat16):
    """distances (B, K) = DeepRBFNetwork.forward(x) for the feature_extractor=None path.

    Weights use PyTorch layout: w1 (H, D), w2 (F, H), A (K, F, F), bb (K, F).
    compute_dtype controls the MXU operand dtype (bf16 default; pass jnp.float32 for
    bit-tighter results).  Accumulation / biases / norms are always f32.
    """
    B, D = x.shape
    H = w1.shape[0]
    F = w2.shape[0]
    K = A.shape[0]
    use_l2 = (distance_metric == "l2")

    # ---- wrapper-side packing (done once; constant-folded under jit) ----
    w1t = w1.T.astype(compute_dtype)                                  # (D, H)
    KF = K * F
    KF_pad = _round_up(KF, 128)                                       # lane-pad fused RHS
    K_pad = _round_up(K, 128)                                         # lane-dense output

    # A_fused[f, k*F+g] = A[k, g, f]  so  feats @ A_fused == concat_k(feats @ A[k].T)
    A_fused = jnp.transpose(A, (2, 0, 1)).reshape(F, KF).astype(jnp.float32)
    # Fold the second Linear into the fused RBF matmul (computed in f32, cast once).
    W2A = jnp.pad(w2.T.astype(jnp.float32) @ A_fused,
                  ((0, 0), (0, KF_pad - KF))).astype(compute_dtype)   # (H, KF_pad)
    b2A = (b2.reshape(1, H if False else F).astype(jnp.float32) @ A_fused
           + bb.reshape(1, KF).astype(jnp.float32))
    b2A = jnp.pad(b2A, ((0, 0), (0, KF_pad - KF)))                    # zero padded lanes

    rows = jnp.arange(KF_pad)
    sel = (((rows[:, None] // F) == jnp.arange(K_pad)[None, :])
           & (rows[:, None] < KF)).astype(jnp.float32)                # (KF_pad, K_pad)

    # ---- batch tiling (sublane rule: tile multiple of 8; ragged last block allowed) ----
    B8 = _round_up(B, 8)
    TB = min(block_b, B8)
    # v7x megacore: if a large batch fits in a single step, split into two grid steps so
    # both TensorCores get work (near-free on single-TC v5e/v6e).
    if TB >= B8 and B8 >= 1024:
        TB = _round_up(pl.cdiv(B8, 2), 8)
    grid_b = pl.cdiv(B, TB)

    kernel = functools.partial(_deep_rbf_kernel, use_l2, compute_dtype)
    out = pl.pallas_call(
        kernel,
        out_shape=jax.ShapeDtypeStruct((B, K_pad), jnp.float32),
        grid_spec=pltpu.PrefetchScalarGridSpec(
            num_scalar_prefetch=0,
            grid=(grid_b,),
            in_specs=[
                pl.BlockSpec((TB, D), lambda i: (i, 0)),          # x: streamed per tile
                pl.BlockSpec((D, H), lambda i: (0, 0)),           # weights: VMEM-resident
                pl.BlockSpec((1, H), lambda i: (0, 0)),
                pl.BlockSpec((H, KF_pad), lambda i: (0, 0)),
                pl.BlockSpec((1, KF_pad), lambda i: (0, 0)),
                pl.BlockSpec((KF_pad, K_pad), lambda i: (0, 0)),
            ],
            out_specs=pl.BlockSpec((TB, K_pad), lambda i: (i, 0)),
        ),
        compiler_params=pltpu.CompilerParams(
            dimension_semantics=("parallel",)),
    )(x, w1t, b1.reshape(1, H).astype(jnp.float32), W2A, b2A, sel)

    # Lane-dense padded buffer; under jit this slice fuses into the consumer.
    return out[:, :K]


def _reference_forward(x, w1, b1, w2, b2, A, bb, distance_metric="l2"):
    h = jnp.maximum(x @ w1.T + b1, 0.0)
    feats = h @ w2.T + b2
    t = jnp.einsum("bf,kgf->bkg", feats, A) + bb[None, :, :]
    if distance_metric == "l2":
        return jnp.sqrt(jnp.sum(t * t, axis=2))
    return jnp.sum(jnp.abs(t), axis=2)


if __name__ == "__main__":
    # Small shapes consistent with the module (feature_extractor=None path).
    batch = 8
    input_dim = 64            # args.input_dim
    hidden = input_dim // 2   # 32
    feature_dim = 32          # args.feature_dim
    num_classes = 4           # args.num_classes
    lambda_margin = 1.0       # args.lambda_margin

    key = jax.random.PRNGKey(0)
    k_x, k_w1, k_w2, k_A = jax.random.split(key, 4)

    x = jax.random.normal(k_x, (batch, input_dim), dtype=jnp.float32)

    # Deterministic parameter init (kaiming-normal-like linears, zero biases).
    w1 = jax.random.normal(k_w1, (hidden, input_dim), dtype=jnp.float32) * jnp.sqrt(2.0 / input_dim)
    b1 = jnp.zeros((hidden,), dtype=jnp.float32)
    w2 = jax.random.normal(k_w2, (feature_dim, hidden), dtype=jnp.float32) * jnp.sqrt(2.0 / hidden)
    b2 = jnp.zeros((feature_dim,), dtype=jnp.float32)

    # RBF parameters: A ~ N(0,1)*1e-4, b filled with lambda_margin/2.
    A = jax.random.normal(k_A, (num_classes, feature_dim, feature_dim), dtype=jnp.float32) * 1e-4
    bb = jnp.full((num_classes, feature_dim), lambda_margin / 2.0, dtype=jnp.float32)

    ref_l2 = _reference_forward(x, w1, b1, w2, b2, A, bb, "l2")
    ref_l1 = _reference_forward(x, w1, b1, w2, b2, A, bb, "l1")

    # f32 compute path (tight tolerance).
    out_f32 = jax.block_until_ready(
        deep_rbf_forward(x, w1, b1, w2, b2, A, bb, distance_metric="l2",
                         compute_dtype=jnp.float32))
    assert out_f32.shape == (batch, num_classes), out_f32.shape
    assert jnp.allclose(out_f32, ref_l2, rtol=1e-4, atol=1e-4), (out_f32, ref_l2)

    # bf16 compute path (default; looser tolerance for bf16 operand rounding).
    out_l2 = jax.block_until_ready(
        deep_rbf_forward(x, w1, b1, w2, b2, A, bb, distance_metric="l2"))
    assert out_l2.shape == (batch, num_classes), out_l2.shape
    assert jnp.allclose(out_l2, ref_l2, rtol=1e-2, atol=1e-3), (out_l2, ref_l2)

    # L1 path (bf16 default).
    out_l1 = jax.block_until_ready(
        deep_rbf_forward(x, w1, b1, w2, b2, A, bb, distance_metric="l1"))
    assert jnp.allclose(out_l1, ref_l1, rtol=1e-2, atol=1e-3), (out_l1, ref_l1)

    # TODO(synk): the frozen feature_extractor CNN + post_extractor (AdaptiveAvgPool2d)
    # branch is not exercised (feature_extractor=None in this config) and is not
    # implemented as a Pallas kernel.
    print("KERNEL_OK")
</pallas_src>

<mosaic_0001>
module attributes {stable_mosaic.version = 11 : i64} {
  func.func @_deep_rbf_kernel(%arg0: i32, %arg1: memref<8x64xf32, #tpu.memory_space<vmem>>, %arg2: memref<64x32xf32, #tpu.memory_space<vmem>>, %arg3: memref<1x32xf32, #tpu.memory_space<vmem>>, %arg4: memref<32x128xf32, #tpu.memory_space<vmem>>, %arg5: memref<1x128xf32, #tpu.memory_space<vmem>>, %arg6: memref<128x128xf32, #tpu.memory_space<vmem>>, %arg7: memref<8x128xf32, #tpu.memory_space<vmem>>) attributes {dimension_semantics = [#tpu.dimension_semantics<parallel>], iteration_bounds = array<i64: 1>, scalar_prefetch = 0 : i64, scratch_operands = 0 : i64, tpu.core_type = #tpu.core_type<tc>, window_params = [{transform_indices = @transform_0, window_bounds = array<i64: 8, 64>}, {pipeline_mode = #tpu.pipeline_mode<synchronous>, transform_indices = @transform_1, window_bounds = array<i64: 64, 32>}, {pipeline_mode = #tpu.pipeline_mode<synchronous>, transform_indices = @transform_2, window_bounds = array<i64: 1, 32>}, {pipeline_mode = #tpu.pipeline_mode<synchronous>, transform_indices = @transform_3, window_bounds = array<i64: 32, 128>}, {pipeline_mode = #tpu.pipeline_mode<synchronous>, transform_indices = @transform_4, window_bounds = array<i64: 1, 128>}, {pipeline_mode = #tpu.pipeline_mode<synchronous>, transform_indices = @transform_5, window_bounds = array<i64: 128, 128>}, {transform_indices = @transform_6, window_bounds = array<i64: 8, 128>}]} {
    %c0 = arith.constant 0 : index
    %c0_0 = arith.constant 0 : index
    %0 = vector.load %arg1[%c0, %c0_0] : memref<8x64xf32, #tpu.memory_space<vmem>>, vector<8x64xf32>
    %c0_1 = arith.constant 0 : index
    %c0_2 = arith.constant 0 : index
    %1 = vector.load %arg2[%c0_1, %c0_2] : memref<64x32xf32, #tpu.memory_space<vmem>>, vector<64x32xf32>
    %cst = arith.constant dense<0.000000e+00> : vector<8x32xf32>
    %2 = tpu.matmul %0, %1, %cst {dimension_numbers = #tpu.dot_dimension_numbers<[1], [0], [0], [1], [0, 0, 1, 1], [], []>} : vector<8x64xf32>, vector<64x32xf32>, vector<8x32xf32> -> vector<8x32xf32>
    %c0_3 = arith.constant 0 : index
    %c0_4 = arith.constant 0 : index
    %3 = vector.load %arg3[%c0_3, %c0_4] : memref<1x32xf32, #tpu.memory_space<vmem>>, vector<1x32xf32>
    %4 = vector.broadcast %3 : vector<1x32xf32> to vector<8x32xf32>
    %5 = arith.addf %2, %4 : vector<8x32xf32>
    %cst_5 = arith.constant 0.000000e+00 : f32
    %6 = vector.broadcast %cst_5 : f32 to vector<8x32xf32>
    %7 = arith.maximumf %5, %6 : vector<8x32xf32>
    %c0_6 = arith.constant 0 : index
    %c0_7 = arith.constant 0 : index
    %8 = vector.load %arg4[%c0_6, %c0_7] : memref<32x128xf32, #tpu.memory_space<vmem>>, vector<32x128xf32>
    %cst_8 = arith.constant dense<0.000000e+00> : vector<8x128xf32>
    %9 = tpu.matmul %7, %8, %cst_8 {dimension_numbers = #tpu.dot_dimension_numbers<[1], [0], [0], [1], [0, 0, 1, 1], [], []>} : vector<8x32xf32>, vector<32x128xf32>, vector<8x128xf32> -> vector<8x128xf32>
    %c0_9 = arith.constant 0 : index
    %c0_10 = arith.constant 0 : index
    %10 = vector.load %arg5[%c0_9, %c0_10] : memref<1x128xf32, #tpu.memory_space<vmem>>, vector<1x128xf32>
    %11 = vector.broadcast %10 : vector<1x128xf32> to vector<8x128xf32>
    %12 = arith.addf %9, %11 : vector<8x128xf32>
    %13 = arith.mulf %12, %12 : vector<8x128xf32>
    %c0_11 = arith.constant 0 : index
    %c0_12 = arith.constant 0 : index
    %14 = vector.load %arg6[%c0_11, %c0_12] : memref<128x128xf32, #tpu.memory_space<vmem>>, vector<128x128xf32>
    %cst_13 = arith.constant dense<0.000000e+00> : vector<8x128xf32>
    %15 = tpu.matmul %13, %14, %cst_13 {dimension_numbers = #tpu.dot_dimension_numbers<[1], [0], [0], [1], [0, 0, 1, 1], [], []>} : vector<8x128xf32>, vector<128x128xf32>, vector<8x128xf32> -> vector<8x128xf32>
    %16 = math.sqrt %15 : vector<8x128xf32>
    %c0_14 = arith.constant 0 : index
    %c0_15 = arith.constant 0 : index
    %17 = vector.load %arg7[%c0_14, %c0_15] : memref<8x128xf32, #tpu.memory_space<vmem>>, vector<8x128xf32>
    tpu.vector_store %arg7[%c0_14, %c0_15], %16 {strides = array<i32>} : memref<8x128xf32, #tpu.memory_space<vmem>>, vector<8x128xf32>,
    return
  }
  func.func @transform_0(%arg0: i32) -> (i32, i32) {
    %c0_i32 = arith.constant 0 : i32
    %c0_i32_0 = arith.constant 0 : i32
    return %arg0, %c0_i32 : i32, i32
  }
  func.func @transform_1(%arg0: i32) -> (i32, i32) {
    %c0_i32 = arith.constant 0 : i32
    %c0_i32_0 = arith.constant 0 : i32
    %c0_i32_1 = arith.constant 0 : i32
    return %c0_i32, %c0_i32_0 : i32, i32
  }
  func.func @transform_2(%arg0: i32) -> (i32, i32) {
    %c0_i32 = arith.constant 0 : i32
    %c0_i32_0 = arith.constant 0 : i32
    %c0_i32_1 = arith.constant 0 : i32
    return %c0_i32, %c0_i32_0 : i32, i32
  }
  func.func @transform_3(%arg0: i32) -> (i32, i32) {
    %c0_i32 = arith.constant 0 : i32
    %c0_i32_0 = arith.constant 0 : i32
    %c0_i32_1 = arith.constant 0 : i32
    return %c0_i32, %c0_i32_0 : i32, i32
  }
  func.func @transform_4(%arg0: i32) -> (i32, i32) {
    %c0_i32 = arith.constant 0 : i32
    %c0_i32_0 = arith.constant 0 : i32
    %c0_i32_1 = arith.constant 0 : i32
    return %c0_i32, %c0_i32_0 : i32, i32
  }
  func.func @transform_5(%arg0: i32) -> (i32, i32) {
    %c0_i32 = arith.constant 0 : i32
    %c0_i32_0 = arith.constant 0 : i32
    %c0_i32_1 = arith.constant 0 : i32
    return %c0_i32, %c0_i32_0 : i32, i32
  }
  func.func @transform_6(%arg0: i32) -> (i32, i32) {
    %c0_i32 = arith.constant 0 : i32
    %c0_i32_0 = arith.constant 0 : i32
    return %arg0, %c0_i32 : i32, i32
  }
}

</mosaic_0001>

<llo_original>
// kernel: tpu_custom_call.1
$region0: #{tpu_custom_call.1}
  #allocation0 [shape = 'u32[]', space=smem, size = 0x4, offset = 0x4, fixed_abs, tag = 'smem constant byte address 0x4 - core index']
  #allocation1 [shape = 'u32[144,128]{1,0:T(1,128)}', space=vmem, size = 0x12000, scoped, tag = 'internal scratch']
  %s0 = inlined_call_operand.vmem [shape: f32[8,64], index: 0, kind: input, shape index: {}]
  %s1 = inlined_call_operand.vmem [shape: f32[64,32], index: 1, kind: input, shape index: {}]
  %s2 = inlined_call_operand.vmem [shape: f32[1,32], index: 2, kind: input, shape index: {}]
  %s3 = inlined_call_operand.vmem [shape: f32[32,128], index: 3, kind: input, shape index: {}]
  %s4 = inlined_call_operand.vmem [shape: f32[1,128], index: 4, kind: input, shape index: {}]
  %s5 = inlined_call_operand.hbm [shape: f32[128,128], index: 5, kind: input, shape index: {}]
  %s6 = inlined_call_operand.hbm [shape: f32[8,128], index: 6, kind: output, shape index: {}]
  %s7 = sld [smem:[#allocation0]]
  $region38: #{tpu_custom_call.1} parent=0
    _
  %s9 = ssub.s32 1, %s7
  %s10 = scalar_select 0, %s9, %s7
  $region1: #{tpu_custom_call.1} parent=0
    #allocation2 [shape = 'u8[65536]{0}', space=vmem, size = 0x10000, scoped, tag = 'input window, operand 5, single buffered']
    #allocation3 [shape = 's32[1]{0}', space=sflag, size = 0x4, scoped, tag = 'scoped memory for tpu_custom_call.1']
    #allocation4 [shape = 's32[1]{0}', space=sflag, size = 0x4, scoped, tag = 'scoped memory for tpu_custom_call.1']
    #allocation5 [shape = 'u8[4096]{0}', space=vmem, size = 0x1000, scoped, tag = 'output window, operand 0, single buffered']
    %11 = vsyncpa [#allocation3], 0
    %12 = vsyncpa [#allocation4], 0
    // Predicated region
    $region2: #{tpu_custom_call.1} parent=1 // pred_check
      _
    $region3: #{tpu_custom_call.1} parent=1 // pred_check_branch
      %14 = sbr.rel (0) target = $region5
    $region4: #{tpu_custom_call.1} parent=1 // pred_region
      _
    $region5: #{tpu_custom_call.1} parent=1 // pred_fallthru
      _
    // Predicated region
    $region6: #{tpu_custom_call.1} parent=1 // pred_check
      _
    $region7: #{tpu_custom_call.1} parent=1 // pred_check_branch
      %16 = sbr.rel (0) target = $region9
    $region8: #{tpu_custom_call.1} parent=1 // pred_region
      _
    $region9: #{tpu_custom_call.1} parent=1 // pred_fallthru
      _
    // Predicated region
    $region10: #{tpu_custom_call.1} parent=1 // pred_check
      _
    $region11: #{tpu_custom_call.1} parent=1 // pred_check_branch
      %18 = sbr.rel (0) target = $region13
    $region12: #{tpu_custom_call.1} parent=1 // pred_region
      _
    $region13: #{tpu_custom_call.1} parent=1 // pred_fallthru
      _
    // Predicated region
    $region14: #{tpu_custom_call.1} parent=1 // pred_check
      _
    $region15: #{tpu_custom_call.1} parent=1 // pred_check_branch
      %20 = sbr.rel (0) target = $region17
    $region16: #{tpu_custom_call.1} parent=1 // pred_region
      _
    $region17: #{tpu_custom_call.1} parent=1 // pred_fallthru
      _
    // Predicated region
    $region18: #{tpu_custom_call.1} parent=1 // pred_check
      _
    $region19: #{tpu_custom_call.1} parent=1 // pred_check_branch
      %22 = sbr.rel (0) target = $region21
    $region20: #{tpu_custom_call.1} parent=1 // pred_region
      _
    $region21: #{tpu_custom_call.1} parent=1 // pred_fallthru
      _
    // Predicated region
    $region22: #{tpu_custom_call.1} parent=1 // pred_check
      _
    $region23: #{tpu_custom_call.1} parent=1 // pred_check_branch
      %24 = sbr.rel (0) target = $region25
    $region24: #{tpu_custom_call.1} parent=1 // pred_region
      %s26 = ssub.s32 2048, 2048
      %27 = vsyncadd [#allocation3], %s26
      %s28 = sshll.u32 [#allocation2], 4
      %s29 = int_to_ptr.vmem [resolvable:$true] %s28
      %34 = dma.hbm_to_vmem [thread:$0]  %s5, 2048, %s29, [#allocation3], 128, 128, 8
    $region25: #{tpu_custom_call.1} parent=1 // pred_fallthru
      _
    // Predicated region
    $region26: #{tpu_custom_call.1} parent=1 // pred_check
      _
    $region27: #{tpu_custom_call.1} parent=1 // pred_check_branch
      %36 = sbr.rel (0) target = $region29
    $region28: #{tpu_custom_call.1} parent=1 // pred_region
      %37 = dma.done [#allocation3], 2048
    $region29: #{tpu_custom_call.1} parent=1 // pred_fallthru
      _
    %v38 = vld [vmem:[%s0] sm:$0xff]
    %v39 = vld [vmem:[%s1] sm:$0xff]
    %v40 = vld [vmem:[%s1 + $0x8] sm:$0xff]
    %v41 = vld [vmem:[%s1 + $0x10] sm:$0xff]
    %v42 = vld [vmem:[%s1 + $0x18] sm:$0xff]
    %v43 = vld [vmem:[%s1 + $0x20] sm:$0xff]
    %v44 = vld [vmem:[%s1 + $0x28] sm:$0xff]
    %v45 = vld [vmem:[%s1 + $0x30] sm:$0xff]
    %v46 = vld [vmem:[%s1 + $0x38] sm:$0xff]
    %v47 = vld [vmem:[%s2] sm:$0x1]
    %v49 = vlaneseq
    %v50 = vshrl.u32 %v49, 7
    %v51 = vsub.s32 0, %v50
    %v52 = vrot.slane %v47, %v51
    %vm54 = vcmask 523264
    %v56 = vsel %vm54, %v38, 0
    %58 = vmatprep.subr.mxu0 0.0
    %59 = vmatpush1.msra.mxu0 0.0
    %60 = vmatprep.subr.mxu0 0.0
    %61 = vmatpush1.msra.mxu0 0.0
    %62 = vmatprep.subr.mxu0 0.0
    %63 = vmatpush1.msra.mxu0 0.0
    %64 = vmatprep.subr.mxu0 0.0
    %65 = vmatpush1.msra.mxu0 0.0
    %66 = vmatprep.subr.mxu0 0.0
    %67 = vmatpush1.msra.mxu0 0.0
    %68 = vmatprep.subr.mxu0 0.0
    %69 = vmatpush1.msra.mxu0 0.0
    %70 = vmatprep.subr.mxu0 0.0
    %71 = vmatpush1.msra.mxu0 0.0
    %72 = vmatprep.subr.mxu0 0.0
    %73 = vmatpush1.msra.mxu0 0.0
    %74 = vmatprep.subr.mxu0 0.0
    %75 = vmatpush1.msra.mxu0 %v46
    %76 = vmatprep.subr.mxu0 0.0
    %77 = vmatpush1.msra.mxu0 %v45
    %78 = vmatprep.subr.mxu0 0.0
    %79 = vmatpush1.msra.mxu0 %v44
    %80 = vmatprep.subr.mxu0 0.0
    %81 = vmatpush1.msra.mxu0 %v43
    %82 = vmatprep.subr.mxu0 0.0
    %83 = vmatpush1.msra.mxu0 %v42
    %84 = vmatprep.subr.mxu0 0.0
    %85 = vmatpush1.msra.mxu0 %v41
    %86 = vmatprep.subr.mxu0 0.0
    %87 = vmatpush1.msra.mxu0 %v40
    %88 = vmatprep.subr.mxu0 0.0
    %89 = vmatpush1.msra.mxu0 %v39
    %90 = vmatprep.subr.mxu0 0.0
    %91 = vmatpush2.msra.mxu0 0.0
    %92 = vmatprep.subr.mxu0 0.0
    %93 = vmatpush2.msra.mxu0 0.0
    %94 = vmatprep.subr.mxu0 0.0
    %95 = vmatpush2.msra.mxu0 0.0
    %96 = vmatprep.subr.mxu0 0.0
    %97 = vmatpush2.msra.mxu0 0.0
    %98 = vmatprep.subr.mxu0 0.0
    %99 = vmatpush2.msra.mxu0 0.0
    %100 = vmatprep.subr.mxu0 0.0
    %101 = vmatpush2.msra.mxu0 0.0
    %102 = vmatprep.subr.mxu0 0.0
    %103 = vmatpush2.msra.mxu0 0.0
    %104 = vmatprep.subr.mxu0 0.0
    %105 = vmatpush2.msra.mxu0 0.0
    %106 = vmatprep.subr.mxu0 0.0
    %107 = vmatpush2.msra.mxu0 0.0
    %108 = vmatprep.subr.mxu0 0.0
    %109 = vmatpush2.msra.mxu0 0.0
    %110 = vmatprep.subr.mxu0 0.0
    %111 = vmatpush2.msra.mxu0 0.0
    %112 = vmatprep.subr.mxu0 0.0
    %113 = vmatpush2.msra.mxu0 0.0
    %114 = vmatprep.subr.mxu0 0.0
    %115 = vmatpush2.msra.mxu0 0.0
    %116 = vmatprep.subr.mxu0 0.0
    %117 = vmatpush2.msra.mxu0 0.0
    %118 = vmatprep.subr.mxu0 0.0
    %119 = vmatpush2.msra.mxu0 0.0
    %120 = vmatprep.subr.mxu0 0.0
    %121 = vmatpush2.msra.mxu0 0.0
    %122 = vmatprep.mubr.f32.mxu0 0.0
    %123 = vmatmul.mubr.f32.gmra.mxu0 %v56
    %v124 = vpop.f32.mrf.mxu0
    %v125 = vadd.f32 %v52, %v124
    %v126 = vpop.f32.mrf.mxu0
    %127 = vdwg.mxu0
    %v128 = vmax.f32 %v125, 0.0
    %v129 = vld [vmem:[%s3] sm:$0xff]
    %v130 = vld [vmem:[%s3 + $0x8] sm:$0xff]
    %v131 = vld [vmem:[%s3 + $0x10] sm:$0xff]
    %v132 = vld [vmem:[%s3 + $0x18] sm:$0xff]
    %v133 = vld [vmem:[%s4] sm:$0x1]
    %v135 = vlaneseq
    %v136 = vshrl.u32 %v135, 7
    %v137 = vsub.s32 0, %v136
    %v138 = vrot.slane %v133, %v137
    %vm140 = vcmask 261120
    %v142 = vsel %vm140, %v128, 0
    %144 = vmatprep.subr.mxu0 0.0
    %145 = vmatpush1.msra.mxu0 0.0
    %146 = vmatprep.subr.mxu0 0.0
    %147 = vmatpush1.msra.mxu0 0.0
    %148 = vmatprep.subr.mxu0 0.0
    %149 = vmatpush1.msra.mxu0 0.0
    %150 = vmatprep.subr.mxu0 0.0
    %151 = vmatpush1.msra.mxu0 0.0
    %152 = vmatprep.subr.mxu0 0.0
    %153 = vmatpush1.msra.mxu0 0.0
    %154 = vmatprep.subr.mxu0 0.0
    %155 = vmatpush1.msra.mxu0 0.0
    %156 = vmatprep.subr.mxu0 0.0
    %157 = vmatpush1.msra.mxu0 0.0
    %158 = vmatprep.subr.mxu0 0.0
    %159 = vmatpush1.msra.mxu0 0.0
    %160 = vmatprep.subr.mxu0 0.0
    %161 = vmatpush1.msra.mxu0 0.0
    %162 = vmatprep.subr.mxu0 0.0
    %163 = vmatpush1.msra.mxu0 0.0
    %164 = vmatprep.subr.mxu0 0.0
    %165 = vmatpush1.msra.mxu0 0.0
    %166 = vmatprep.subr.mxu0 0.0
    %167 = vmatpush1.msra.mxu0 0.0
    %168 = vmatprep.subr.mxu0 0.0
    %169 = vmatpush1.msra.mxu0 %v132
    %170 = vmatprep.subr.mxu0 0.0
    %171 = vmatpush1.msra.mxu0 %v131
    %172 = vmatprep.subr.mxu0 0.0
    %173 = vmatpush1.msra.mxu0 %v130
    %174 = vmatprep.subr.mxu0 0.0
    %175 = vmatpush1.msra.mxu0 %v129
    %176 = vmatprep.subr.mxu0 0.0
    %177 = vmatpush2.msra.mxu0 0.0
    %178 = vmatprep.subr.mxu0 0.0
    %179 = vmatpush2.msra.mxu0 0.0
    %180 = vmatprep.subr.mxu0 0.0
    %181 = vmatpush2.msra.mxu0 0.0
    %182 = vmatprep.subr.mxu0 0.0
    %183 = vmatpush2.msra.mxu0 0.0
    %184 = vmatprep.subr.mxu0 0.0
    %185 = vmatpush2.msra.mxu0 0.0
    %186 = vmatprep.subr.mxu0 0.0
    %187 = vmatpush2.msra.mxu0 0.0
    %188 = vmatprep.subr.mxu0 0.0
    %189 = vmatpush2.msra.mxu0 0.0
    %190 = vmatprep.subr.mxu0 0.0
    %191 = vmatpush2.msra.mxu0 0.0
    %192 = vmatprep.subr.mxu0 0.0
    %193 = vmatpush2.msra.mxu0 0.0
    %194 = vmatprep.subr.mxu0 0.0
    %195 = vmatpush2.msra.mxu0 0.0
    %196 = vmatprep.subr.mxu0 0.0
    %197 = vmatpush2.msra.mxu0 0.0
    %198 = vmatprep.subr.mxu0 0.0
    %199 = vmatpush2.msra.mxu0 0.0
    %200 = vmatprep.subr.mxu0 0.0
    %201 = vmatpush2.msra.mxu0 0.0
    %202 = vmatprep.subr.mxu0 0.0
    %203 = vmatpush2.msra.mxu0 0.0
    %204 = vmatprep.subr.mxu0 0.0
    %205 = vmatpush2.msra.mxu0 0.0
    %206 = vmatprep.subr.mxu0 0.0
    %207 = vmatpush2.msra.mxu0 0.0
    %208 = vmatprep.mubr.f32.mxu0 0.0
    %209 = vmatmul.mubr.f32.gmra.mxu0 %v142
    %v210 = vpop.f32.mrf.mxu0
    %v211 = vadd.f32 %v138, %v210
    %v212 = vpop.f32.mrf.mxu0
    %213 = vdwg.mxu0
    %v214 = vmul.f32 %v211, %v211
    %v215 = vld [vmem:[#allocation2] sm:$0xff]
    %v216 = vld [vmem:[#allocation2 + $0x8] sm:$0xff]
    %v217 = vld [vmem:[#allocation2 + $0x10] sm:$0xff]
    %v218 = vld [vmem:[#allocation2 + $0x18] sm:$0xff]
    %v219 = vld [vmem:[#allocation2 + $0x20] sm:$0xff]
    %v220 = vld [vmem:[#allocation2 + $0x28] sm:$0xff]
    %v221 = vld [vmem:[#allocation2 + $0x30] sm:$0xff]
    %v222 = vld [vmem:[#allocation2 + $0x38] sm:$0xff]
    %v223 = vld [vmem:[#allocation2 + $0x40] sm:$0xff]
    %v224 = vld [vmem:[#allocation2 + $0x48] sm:$0xff]
    %v225 = vld [vmem:[#allocation2 + $0x50] sm:$0xff]
    %v226 = vld [vmem:[#allocation2 + $0x58] sm:$0xff]
    %v227 = vld [vmem:[#allocation2 + $0x60] sm:$0xff]
    %v228 = vld [vmem:[#allocation2 + $0x68] sm:$0xff]
    %v229 = vld [vmem:[#allocation2 + $0x70] sm:$0xff]
    %v230 = vld [vmem:[#allocation2 + $0x78] sm:$0xff]
    %231 = vmatprep.subr.mxu0 0.0
    %232 = vmatpush1.msra.mxu0 %v230
    %233 = vmatprep.subr.mxu0 0.0
    %234 = vmatpush1.msra.mxu0 %v229
    %235 = vmatprep.subr.mxu0 0.0
    %236 = vmatpush1.msra.mxu0 %v228
    %237 = vmatprep.subr.mxu0 0.0
    %238 = vmatpush1.msra.mxu0 %v227
    %239 = vmatprep.subr.mxu0 0.0
    %240 = vmatpush1.msra.mxu0 %v226
    %241 = vmatprep.subr.mxu0 0.0
    %242 = vmatpush1.msra.mxu0 %v225
    %243 = vmatprep.subr.mxu0 0.0
    %244 = vmatpush1.msra.mxu0 %v224
    %245 = vmatprep.subr.mxu0 0.0
    %246 = vmatpush1.msra.mxu0 %v223
    %247 = vmatprep.subr.mxu0 0.0
    %248 = vmatpush1.msra.mxu0 %v222
    %249 = vmatprep.subr.mxu0 0.0
    %250 = vmatpush1.msra.mxu0 %v221
    %251 = vmatprep.subr.mxu0 0.0
    %252 = vmatpush1.msra.mxu0 %v220
    %253 = vmatprep.subr.mxu0 0.0
    %254 = vmatpush1.msra.mxu0 %v219
    %255 = vmatprep.subr.mxu0 0.0
    %256 = vmatpush1.msra.mxu0 %v218
    %257 = vmatprep.subr.mxu0 0.0
    %258 = vmatpush1.msra.mxu0 %v217
    %259 = vmatprep.subr.mxu0 0.0
    %260 = vmatpush1.msra.mxu0 %v216
    %261 = vmatprep.subr.mxu0 0.0
    %262 = vmatpush1.msra.mxu0 %v215
    %263 = vmatprep.subr.mxu0 0.0
    %264 = vmatpush2.msra.mxu0 0.0
    %265 = vmatprep.subr.mxu0 0.0
    %266 = vmatpush2.msra.mxu0 0.0
    %267 = vmatprep.subr.mxu0 0.0
    %268 = vmatpush2.msra.mxu0 0.0
    %269 = vmatprep.subr.mxu0 0.0
    %270 = vmatpush2.msra.mxu0 0.0
    %271 = vmatprep.subr.mxu0 0.0
    %272 = vmatpush2.msra.mxu0 0.0
    %273 = vmatprep.subr.mxu0 0.0
    %274 = vmatpush2.msra.mxu0 0.0
    %275 = vmatprep.subr.mxu0 0.0
    %276 = vmatpush2.msra.mxu0 0.0
    %277 = vmatprep.subr.mxu0 0.0
    %278 = vmatpush2.msra.mxu0 0.0
    %279 = vmatprep.subr.mxu0 0.0
    %280 = vmatpush2.msra.mxu0 0.0
    %281 = vmatprep.subr.mxu0 0.0
    %282 = vmatpush2.msra.mxu0 0.0
    %283 = vmatprep.subr.mxu0 0.0
    %284 = vmatpush2.msra.mxu0 0.0
    %285 = vmatprep.subr.mxu0 0.0
    %286 = vmatpush2.msra.mxu0 0.0
    %287 = vmatprep.subr.mxu0 0.0
    %288 = vmatpush2.msra.mxu0 0.0
    %289 = vmatprep.subr.mxu0 0.0
    %290 = vmatpush2.msra.mxu0 0.0
    %291 = vmatprep.subr.mxu0 0.0
    %292 = vmatpush2.msra.mxu0 0.0
    %293 = vmatprep.subr.mxu0 0.0
    %294 = vmatpush2.msra.mxu0 0.0
    %295 = vmatprep.mubr.f32.mxu0 0.0
    %296 = vmatmul.mubr.f32.gmra.mxu0 %v214
    %v297 = vpop.f32.mrf.mxu0
    %v298 = vadd.f32 0.0, %v297
    %v299 = vpop.f32.mrf.mxu0
    %300 = vdwg.mxu0
    %v301 = vrsqrt.pop %v298
    %v302 = vmul.f32 %v298, %v301
    %vm303 = vcmp.eq.f32.partialorder %v298, inf
    %v304 = vsel %vm303, %v298, %v302
    %vm305 = vcmp.eq.f32.partialorder %v298, 0.0
    %v306 = vand.u32 %v298, 2147483648
    %v307 = vsel %vm305, %v306, %v304
    %308 = vst [vmem:[#allocation5] sm:$0xff] %v307
    // Predicated region
    $region30: #{tpu_custom_call.1} parent=1 // pred_check
      _
    $region31: #{tpu_custom_call.1} parent=1 // pred_check_branch
      %310 = sbr.rel (0) target = $region33
    $region32: #{tpu_custom_call.1} parent=1 // pred_region
      %s312 = ssub.s32 128, 128
      %313 = vsyncadd [#allocation4], %s312
      %s315 = sshll.u32 [#allocation5], 4
      %s316 = int_to_ptr.vmem [resolvable:$true] %s315
      %318 = dma.vmem_to_hbm [thread:$0]  %s316, 128, %s6, [#allocation4]
    $region33: #{tpu_custom_call.1} parent=1 // pred_fallthru
      _
    // Predicated region
    $region34: #{tpu_custom_call.1} parent=1 // pred_check
      _
    $region35: #{tpu_custom_call.1} parent=1 // pred_check_branch
      %320 = sbr.rel (0) target = $region37
    $region36: #{tpu_custom_call.1} parent=1 // pred_region
      %321 = dma.done [#allocation4], 128
    $region37: #{tpu_custom_call.1} parent=1 // pred_fallthru
      _
    %322 = vsyncpa [#allocation3], 1
    %323 = vsyncpa [#allocation4], 1

</llo_original>
